<compile_context>
chip_gen: v6e
topology: v6e:2x2x1
jax: 0.10.0
libtpu: 0.0.40
codegen_flags: <defaults>
</compile_context>

<pallas_src>
from functools import partial

import jax
import jax.numpy as jnp
from jax.experimental import pallas as pl
from jax.experimental.pallas import tpu as pltpu


# ----------------------------------------------------------------------------
# Helpers
# ----------------------------------------------------------------------------
def _vmem_budget_bytes():
    """Chip-aware VMEM budget: ~80% of the physical per-TC VMEM."""
    cap = 64 << 20  # safe default: v7x has 64 MiB/TC (v5e/v6e have 128 MiB)
    try:
        cap = int(pltpu.get_tpu_info().vmem_capacity_bytes)
    except Exception:
        pass
    return int(cap * 0.8)


def _largest_divisor_leq(n, k):
    k = max(1, min(n, k))
    while n % k:
        k -= 1
    return k


# ----------------------------------------------------------------------------
# Fast path kernel: Bt whole samples resident in VMEM per grid step.
# ----------------------------------------------------------------------------
def _gn_kernel(x_ref, gamma_ref, beta_ref, o_ref, *, eps, inv_n):
    # x block: (Bt, C, HW) in the model's native dtype; upcast on load so HBM
    # traffic stays narrow while all arithmetic is f32.
    x = x_ref[...].astype(jnp.float32)
    # num_groups == 1: per-sample stats over all channels and spatial
    # positions.  Lane reduce first, then sublane reduce (no MXU involved).
    row = jnp.sum(x, axis=2, keepdims=True)                    # (Bt, C, 1)
    mean = jnp.sum(row, axis=1, keepdims=True) * inv_n         # (Bt, 1, 1)
    xc = x - mean
    row_sq = jnp.sum(xc * xc, axis=2, keepdims=True)           # centered 2-pass
    var = jnp.sum(row_sq, axis=1, keepdims=True) * inv_n       # (Bt, 1, 1)
    rstd = jax.lax.rsqrt(var + eps)                            # EUP
    # Fold rstd into the per-channel affine once per (sample, channel).
    scale = gamma_ref[...][None, :, :] * rstd                  # (Bt, C, 1)
    shift = beta_ref[...][None, :, :]                          # (1, C, 1)
    o_ref[...] = (xc * scale + shift).astype(o_ref.dtype)


# ----------------------------------------------------------------------------
# Tiled fallback kernel: normalize + affine over HW tiles; per-sample mean and
# rstd arrive as small f32 arrays in SMEM.
# ----------------------------------------------------------------------------
def _gn_apply_tiled_kernel(mean_ref, rstd_ref, x_ref, gamma_ref, beta_ref, o_ref):
    b = pl.program_id(0)
    m = mean_ref[b]                          # scalar f32 from SMEM
    r = rstd_ref[b]
    x = x_ref[0].astype(jnp.float32)         # (C, T), lane-dense
    scale = gamma_ref[...] * r               # (C, 1)
    shift = beta_ref[...] - m * scale        # (x - m)*g*r + b  ==  x*scale + shift
    o_ref[0] = (x * scale + shift).astype(o_ref.dtype)


def _groupnorm_tiled(x3, gamma2, beta2, *, eps):
    """Fallback for samples too large to sit whole in VMEM (v7x 64 MiB cliff).

    Stats are computed with plain XLA reductions (memory-bound at any size);
    the normalize/affine pass is a tiled, lane-dense Pallas kernel.
    """
    # TODO(synk): fuse the stats pass into Pallas too (grid over HW tiles with
    # pl.when init/finalize accumulators) to save one extra HBM read of x.
    B, C, HW = x3.shape
    xf = x3.reshape(B, -1).astype(jnp.float32)
    mean = jnp.mean(xf, axis=1)
    var = jnp.mean(jnp.square(xf - mean[:, None]), axis=1)     # centered, biased
    rstd = jax.lax.rsqrt(var + float(eps))

    # ~4 MiB of f32 working set per tile, lane-aligned (multiple of 128).
    t = max(128, min(HW, ((4 << 20) // (C * 16)) // 128 * 128))
    t = min(t, HW)
    n_t = pl.cdiv(HW, t)

    out = pl.pallas_call(
        _gn_apply_tiled_kernel,
        grid=(B, n_t),
        in_specs=[pl.BlockSpec(memory_space=pltpu.MemorySpace.SMEM),   # mean
                  pl.BlockSpec(memory_space=pltpu.MemorySpace.SMEM),   # rstd
                  pl.BlockSpec((1, C, t), lambda b, i: (b, 0, i)),
                  pl.BlockSpec((C, 1), lambda b, i: (0, 0)),
                  pl.BlockSpec((C, 1), lambda b, i: (0, 0))],
        out_specs=pl.BlockSpec((1, C, t), lambda b, i: (b, 0, i)),
        out_shape=jax.ShapeDtypeStruct((B, C, HW), x3.dtype),
        compiler_params=pltpu.CompilerParams(
            dimension_semantics=("parallel", "arbitrary")),
    )(mean, rstd, x3, gamma2, beta2)
    return out


# ----------------------------------------------------------------------------
# Wrappers
# ----------------------------------------------------------------------------
def prenorm_groupnorm(x, gamma, beta, *, eps=1e-5, force_tiled=False):
    """nn.GroupNorm(1, C) over NCHW input via Pallas.  Output keeps x.dtype."""
    B, C, H, W = x.shape
    HW = H * W
    x3 = x.reshape(B, C, HW)                       # pure reshape, native dtype
    gamma2 = gamma.reshape(C, 1).astype(jnp.float32)
    beta2 = beta.reshape(C, 1).astype(jnp.float32)
    # NOTE: real DDPM widths (64-512 channels) are sublane-aligned; a tiny C
    # (like the test shape) only under-fills vregs, which is harmless.

    in_b = x.dtype.itemsize
    out_b = in_b
    budget = _vmem_budget_bytes()
    # Rough per-sample VMEM: double-buffered in + out blocks plus ~3 f32 temps.
    per_sample = C * HW * (2 * in_b + 2 * out_b + 12)

    if force_tiled or per_sample > budget:
        return _groupnorm_tiled(x3, gamma2, beta2, eps=eps).reshape(B, C, H, W)

    # ---- fast path: whole samples resident in VMEM, Bt samples per step ----
    bt_vmem = max(1, budget // per_sample)
    bt_roofline = max(1, (2 << 20) // max(1, C * HW * in_b))   # ~2 MiB DMAs
    bt = min(B, bt_vmem, bt_roofline)
    if B >= 2:                     # keep >= 2 parallel steps for v7x's 2 TCs
        bt = min(bt, max(1, B // 2))
    bt = _largest_divisor_leq(B, bt)

    kern = partial(_gn_kernel, eps=float(eps), inv_n=1.0 / float(C * HW))
    need = bt * per_sample + (1 << 20)
    cp_kwargs = dict(dimension_semantics=("parallel",))
    if need > (16 << 20):
        cp_kwargs["vmem_limit_bytes"] = int(min(max(need, 32 << 20), budget))

    out = pl.pallas_call(
        kern,
        grid=(B // bt,),
        in_specs=[pl.BlockSpec((bt, C, HW), lambda i: (i, 0, 0)),
                  pl.BlockSpec((C, 1), lambda i: (0, 0)),
                  pl.BlockSpec((C, 1), lambda i: (0, 0))],
        out_specs=pl.BlockSpec((bt, C, HW), lambda i: (i, 0, 0)),
        out_shape=jax.ShapeDtypeStruct((B, C, HW), x.dtype),
        compiler_params=pltpu.CompilerParams(**cp_kwargs),
    )(x3, gamma2, beta2)
    return out.reshape(B, C, H, W)


def prenorm_forward(x, gamma, beta, fn=lambda y: y, *, eps=1e-5):
    """forward(x) = fn(GroupNorm(1, dim)(x)).

    `fn` is the arbitrary wrapped module from the PyTorch constructor; it is
    applied here as a plain JAX callable on the Pallas-normalized output.
    """
    return fn(prenorm_groupnorm(x, gamma, beta, eps=eps))


# ----------------------------------------------------------------------------
# Pure-JAX reference (sanity check)
# ----------------------------------------------------------------------------
def prenorm_ref(x, gamma, beta, fn=lambda y: y, eps=1e-5):
    B, C, H, W = x.shape
    xf = x.reshape(B, -1).astype(jnp.float32)
    mean = xf.mean(axis=1).reshape(B, 1, 1, 1)
    var = xf.var(axis=1).reshape(B, 1, 1, 1)
    xn = (x.astype(jnp.float32) - mean) * jax.lax.rsqrt(var + eps)
    xn = xn * gamma[None, :, None, None] + beta[None, :, None, None]
    return fn(xn)


# ----------------------------------------------------------------------------
if __name__ == "__main__":
    B, dim, H, W = 2, 4, 16, 16

    key = jax.random.PRNGKey(0)
    kx, kg, kb = jax.random.split(key, 3)
    x = jax.random.normal(kx, (B, dim, H, W), jnp.float32)
    gamma = 1.0 + 0.1 * jax.random.normal(kg, (dim,), jnp.float32)  # norm.weight
    beta = 0.1 * jax.random.normal(kb, (dim,), jnp.float32)         # norm.bias

    # TODO(synk): `fn` is an arbitrary wrapped module (attention in DDPM);
    # identity is used here so the test exercises exactly the PreNorm math.
    fn = lambda y: y

    # 1) f32, fast (whole-sample-resident) path.
    out = jax.block_until_ready(prenorm_forward(x, gamma, beta, fn))
    ref = prenorm_ref(x, gamma, beta, fn)
    assert out.shape == (B, dim, H, W) and out.dtype == jnp.float32
    err = float(jnp.max(jnp.abs(out - ref)))
    assert jnp.allclose(out, ref, rtol=1e-4, atol=1e-4), err

    # 2) bf16 I/O: cast happens inside the kernel; output stays bf16.
    xb = x.astype(jnp.bfloat16)
    out_b = jax.block_until_ready(prenorm_forward(xb, gamma, beta, fn))
    ref_b = prenorm_ref(xb, gamma, beta, fn)
    assert out_b.dtype == jnp.bfloat16
    err_b = float(jnp.max(jnp.abs(out_b.astype(jnp.float32) - ref_b)))
    assert jnp.allclose(out_b.astype(jnp.float32), ref_b, rtol=2e-2, atol=3e-2), err_b

    # 3) Tiled fallback path, forced at the small shape to exercise it.
    out_t = jax.block_until_ready(
        prenorm_groupnorm(x, gamma, beta, force_tiled=True))
    err_t = float(jnp.max(jnp.abs(out_t - ref)))
    assert jnp.allclose(out_t, ref, rtol=1e-4, atol=2e-4), err_t

    print("KERNEL_OK")
</pallas_src>

<mosaic_0001>
module attributes {stable_mosaic.version = 11 : i64} {
  func.func @_gn_kernel(%arg0: i32, %arg1: memref<1x4x256xf32, #tpu.memory_space<vmem>>, %arg2: memref<4x1xf32, #tpu.memory_space<vmem>>, %arg3: memref<4x1xf32, #tpu.memory_space<vmem>>, %arg4: memref<1x4x256xf32, #tpu.memory_space<vmem>>) attributes {dimension_semantics = [#tpu.dimension_semantics<parallel>], iteration_bounds = array<i64: 2>, scalar_prefetch = 0 : i64, scratch_operands = 0 : i64, tpu.core_type = #tpu.core_type<tc>, window_params = [{transform_indices = @transform_0, window_bounds = array<i64: 1, 4, 256>}, {pipeline_mode = #tpu.pipeline_mode<synchronous>, transform_indices = @transform_1, window_bounds = array<i64: 4, 1>}, {pipeline_mode = #tpu.pipeline_mode<synchronous>, transform_indices = @transform_2, window_bounds = array<i64: 4, 1>}, {transform_indices = @transform_3, window_bounds = array<i64: 1, 4, 256>}]} {
    %c0 = arith.constant 0 : index
    %c0_0 = arith.constant 0 : index
    %c0_1 = arith.constant 0 : index
    %0 = vector.load %arg1[%c0, %c0_0, %c0_1] : memref<1x4x256xf32, #tpu.memory_space<vmem>>, vector<1x4x256xf32>
    %cst = arith.constant dense<0.000000e+00> : vector<1x4xf32>
    %1 = vector.multi_reduction <add>, %0, %cst [2] : vector<1x4x256xf32> to vector<1x4xf32>
    %2 = vector.shape_cast %1 : vector<1x4xf32> to vector<1x4x1xf32>
    %cst_2 = arith.constant dense<0.000000e+00> : vector<1x1xf32>
    %3 = vector.multi_reduction <add>, %2, %cst_2 [1] : vector<1x4x1xf32> to vector<1x1xf32>
    %4 = vector.shape_cast %3 : vector<1x1xf32> to vector<1x1x1xf32>
    %cst_3 = arith.constant 9.765625E-4 : f32
    %5 = vector.broadcast %cst_3 : f32 to vector<1x1x1xf32>
    %6 = arith.mulf %4, %5 : vector<1x1x1xf32>
    %7 = vector.broadcast %6 : vector<1x1x1xf32> to vector<1x4x256xf32>
    %8 = arith.subf %0, %7 : vector<1x4x256xf32>
    %9 = arith.mulf %8, %8 : vector<1x4x256xf32>
    %cst_4 = arith.constant dense<0.000000e+00> : vector<1x4xf32>
    %10 = vector.multi_reduction <add>, %9, %cst_4 [2] : vector<1x4x256xf32> to vector<1x4xf32>
    %11 = vector.shape_cast %10 : vector<1x4xf32> to vector<1x4x1xf32>
    %cst_5 = arith.constant dense<0.000000e+00> : vector<1x1xf32>
    %12 = vector.multi_reduction <add>, %11, %cst_5 [1] : vector<1x4x1xf32> to vector<1x1xf32>
    %13 = vector.shape_cast %12 : vector<1x1xf32> to vector<1x1x1xf32>
    %cst_6 = arith.constant 9.765625E-4 : f32
    %14 = vector.broadcast %cst_6 : f32 to vector<1x1x1xf32>
    %15 = arith.mulf %13, %14 : vector<1x1x1xf32>
    %cst_7 = arith.constant 9.99999974E-6 : f32
    %16 = vector.broadcast %cst_7 : f32 to vector<1x1x1xf32>
    %17 = arith.addf %15, %16 : vector<1x1x1xf32>
    %18 = math.rsqrt %17 : vector<1x1x1xf32>
    %c0_8 = arith.constant 0 : index
    %c0_9 = arith.constant 0 : index
    %19 = vector.load %arg2[%c0_8, %c0_9] : memref<4x1xf32, #tpu.memory_space<vmem>>, vector<4x1xf32>
    %20 = vector.shape_cast %19 : vector<4x1xf32> to vector<1x4x1xf32>
    %21 = vector.broadcast %18 : vector<1x1x1xf32> to vector<1x4x1xf32>
    %22 = arith.mulf %20, %21 : vector<1x4x1xf32>
    %c0_10 = arith.constant 0 : index
    %c0_11 = arith.constant 0 : index
    %23 = vector.load %arg3[%c0_10, %c0_11] : memref<4x1xf32, #tpu.memory_space<vmem>>, vector<4x1xf32>
    %24 = vector.shape_cast %23 : vector<4x1xf32> to vector<1x4x1xf32>
    %25 = vector.broadcast %22 : vector<1x4x1xf32> to vector<1x4x256xf32>
    %26 = arith.mulf %8, %25 : vector<1x4x256xf32>
    %27 = vector.broadcast %24 : vector<1x4x1xf32> to vector<1x4x256xf32>
    %28 = arith.addf %26, %27 : vector<1x4x256xf32>
    %c0_12 = arith.constant 0 : index
    %c0_13 = arith.constant 0 : index
    %c0_14 = arith.constant 0 : index
    %29 = vector.load %arg4[%c0_12, %c0_13, %c0_14] : memref<1x4x256xf32, #tpu.memory_space<vmem>>, vector<1x4x256xf32>
    tpu.vector_store %arg4[%c0_12, %c0_13, %c0_14], %28 {strides = array<i32>} : memref<1x4x256xf32, #tpu.memory_space<vmem>>, vector<1x4x256xf32>,
    return
  }
  func.func @transform_0(%arg0: i32) -> (i32, i32, i32) {
    %c0_i32 = arith.constant 0 : i32
    %c0_i32_0 = arith.constant 0 : i32
    %c0_i32_1 = arith.constant 0 : i32
    return %arg0, %c0_i32, %c0_i32_0 : i32, i32, i32
  }
  func.func @transform_1(%arg0: i32) -> (i32, i32) {
    %c0_i32 = arith.constant 0 : i32
    %c0_i32_0 = arith.constant 0 : i32
    %c0_i32_1 = arith.constant 0 : i32
    return %c0_i32, %c0_i32_0 : i32, i32
  }
  func.func @transform_2(%arg0: i32) -> (i32, i32) {
    %c0_i32 = arith.constant 0 : i32
    %c0_i32_0 = arith.constant 0 : i32
    %c0_i32_1 = arith.constant 0 : i32
    return %c0_i32, %c0_i32_0 : i32, i32
  }
  func.func @transform_3(%arg0: i32) -> (i32, i32, i32) {
    %c0_i32 = arith.constant 0 : i32
    %c0_i32_0 = arith.constant 0 : i32
    %c0_i32_1 = arith.constant 0 : i32
    return %arg0, %c0_i32, %c0_i32_0 : i32, i32, i32
  }
}

</mosaic_0001>

<llo_original>
// kernel: tpu_custom_call.1
$region0: #{tpu_custom_call.1}
  #allocation0 [shape = 'u32[]', space=smem, size = 0x4, offset = 0x4, fixed_abs, tag = 'smem constant byte address 0x4 - core index']
  #allocation1 [shape = 'u32[144,128]{1,0:T(1,128)}', space=vmem, size = 0x12000, scoped, tag = 'internal scratch']
  %s0 = inlined_call_operand.hbm [shape: f32[2,4,256], index: 0, kind: input, shape index: {}]
  %s1 = inlined_call_operand.vmem [shape: f32[4,1], index: 1, kind: input, shape index: {}]
  %s2 = inlined_call_operand.vmem [shape: f32[4,1], index: 2, kind: input, shape index: {}]
  %s3 = inlined_call_operand.hbm [shape: f32[2,4,256], index: 3, kind: output, shape index: {}]
  %s4 = sld [smem:[#allocation0]]
  $region49: #{tpu_custom_call.1} parent=0
    _
  %s6 = ssub.s32 1, %s4
  %s7 = scalar_select 0, %s6, %s4
  $region1: #{tpu_custom_call.1} parent=0
    #allocation2 [shape = 'u8[8192]{0}', space=vmem, size = 0x2000, scoped, tag = 'input window, operand 0']
    #allocation3 [shape = 's32[2]{0}', space=sflag, size = 0x8, scoped, tag = 'scoped memory for tpu_custom_call.1']
    #allocation4 [shape = 's32[2]{0}', space=sflag, size = 0x8, scoped, tag = 'scoped memory for tpu_custom_call.1']
    #allocation5 [shape = 'u8[8192]{0}', space=vmem, size = 0x2000, scoped, tag = 'output window, operand 0']
    %8 = vsyncpa [#allocation3], 0
    %s9 = scalar_lea.sflag [#allocation3], 1
    %10 = vsyncpa %s9, 0
    %11 = vsyncpa [#allocation4], 0
    %s12 = scalar_lea.sflag [#allocation4], 1
    %13 = vsyncpa %s12, 0
    loop: start=0, step=1, limit=4
    $region2: #{tpu_custom_call.1} parent=1 // loop_pre_header
      _
    $region3: #{tpu_custom_call.1} parent=1 // loop_header
      %s15 = sphi 0, %s19
      %p16 = scmp.ge.s32.totalorder %s15, 4
      %s25 = sphi 0, %s27
      %s28 = sphi 0, %s25
      %s29 = sphi 0, %s28
      %s45 = sphi 0, %s29
      %s49 = sphi 0, %s49
      %s51 = sphi 0, %s49
      %s52 = sphi 0, %s51
      %s66 = sphi 0, %s52
      %s70 = sphi 0, %s70
      %s72 = sphi 0, %s70
      %s73 = sphi 0, %s72
      %s87 = sphi 0, %s73
      %s93 = sphi 0, %s95
      %s96 = sphi 0, %s93
      %s97 = sphi 0, %s96
      %s113 = sphi 0, %s97
    $region4: #{tpu_custom_call.1} parent=1 // loop_header_branch
      %18 = sbr.rel (%p16) target = $region8
    $region5: #{tpu_custom_call.1} parent=1 // loop_body
      %s20 = ssub.s32 %s15, 1
      %s21 = ssub.s32 %s15, 2
      %s22 = sadd.s32 %s15, 1
      %s23 = ssub.s32 %s15, %s22
      %p24 = scmp.eq.s32.totalorder %s23, 0
      %s26 = sadd.s32 %s25, 1
      %s27 = scalar_select %p24, %s25, %s26
      %p30 = pneg %p24
      %p31 = scmp.eq.s32.totalorder %s15, 1
      %p32 = por %p30, %p31
      %p33 = scmp.ne.s32.totalorder %s25, %s28
      %p34 = scmp.eq.s32.totalorder %s15, 0
      %p35 = por %p33, %p34
      %p36 = scmp.ne.s32.totalorder %s25, %s28
      %p37 = scmp.eq.s32.totalorder %s20, 1
      %p38 = por %p36, %p37
      %p39 = scmp.ne.s32.totalorder %s28, %s29
      %p40 = scmp.eq.s32.totalorder %s20, 0
      %p41 = por %p39, %p40
      %p42 = scmp.ne.s32.totalorder %s28, %s29
      %p43 = scmp.eq.s32.totalorder %s21, 1
      %p44 = por %p42, %p43
      %p46 = scmp.ne.s32.totalorder %s29, %s45
      %p47 = scmp.eq.s32.totalorder %s21, 0
      %p48 = por %p46, %p47
      %s50 = sadd.s32 %s49, 1
      %p53 = scmp.eq.s32.totalorder %s15, 1
      %p54 = scmp.ne.s32.totalorder %s49, %s51
      %p55 = scmp.eq.s32.totalorder %s15, 0
      %p56 = por %p54, %p55
      %p57 = scmp.ne.s32.totalorder %s49, %s51
      %p58 = scmp.eq.s32.totalorder %s20, 1
      %p59 = por %p57, %p58
      %p60 = scmp.ne.s32.totalorder %s51, %s52
      %p61 = scmp.eq.s32.totalorder %s20, 0
      %p62 = por %p60, %p61
      %p63 = scmp.ne.s32.totalorder %s51, %s52
      %p64 = scmp.eq.s32.totalorder %s21, 1
      %p65 = por %p63, %p64
      %p67 = scmp.ne.s32.totalorder %s52, %s66
      %p68 = scmp.eq.s32.totalorder %s21, 0
      %p69 = por %p67, %p68
      %s71 = sadd.s32 %s70, 1
      %p74 = scmp.eq.s32.totalorder %s15, 1
      %p75 = scmp.ne.s32.totalorder %s70, %s72
      %p76 = scmp.eq.s32.totalorder %s15, 0
      %p77 = por %p75, %p76
      %p78 = scmp.ne.s32.totalorder %s70, %s72
      %p79 = scmp.eq.s32.totalorder %s20, 1
      %p80 = por %p78, %p79
      %p81 = scmp.ne.s32.totalorder %s72, %s73
      %p82 = scmp.eq.s32.totalorder %s20, 0
      %p83 = por %p81, %p82
      %p84 = scmp.ne.s32.totalorder %s72, %s73
      %p85 = scmp.eq.s32.totalorder %s21, 1
      %p86 = por %p84, %p85
      %p88 = scmp.ne.s32.totalorder %s73, %s87
      %p89 = scmp.eq.s32.totalorder %s21, 0
      %p90 = por %p88, %p89
      %s91 = ssub.s32 %s15, %s22
      %p92 = scmp.eq.s32.totalorder %s91, 0
      %s94 = sadd.s32 %s93, 1
      %s95 = scalar_select %p92, %s93, %s94
      %p98 = pneg %p92
      %p99 = scmp.eq.s32.totalorder %s15, 1
      %p100 = por %p98, %p99
      %p101 = scmp.ne.s32.totalorder %s93, %s96
      %p102 = scmp.eq.s32.totalorder %s15, 0
      %p103 = por %p101, %p102
      %p104 = scmp.ne.s32.totalorder %s93, %s96
      %p105 = scmp.eq.s32.totalorder %s20, 1
      %p106 = por %p104, %p105
      %p107 = scmp.ne.s32.totalorder %s96, %s97
      %p108 = scmp.eq.s32.totalorder %s20, 0
      %p109 = por %p107, %p108
      %p110 = scmp.ne.s32.totalorder %s96, %s97
      %p111 = scmp.eq.s32.totalorder %s21, 1
      %p112 = por %p110, %p111
      %p114 = scmp.ne.s32.totalorder %s97, %s113
      %p115 = scmp.eq.s32.totalorder %s21, 0
      %p116 = por %p114, %p115
      %p117 = scmp.le.s32.totalorder 1, %s15
      %p118 = scmp.lt.s32.totalorder %s15, 3
      %p119 = pnand %p117, %p118
      %p120 = pneg %p119
      // Predicated region
      $region9: #{tpu_custom_call.1} parent=5 // pred_check
        _
      $region10: #{tpu_custom_call.1} parent=5 // pred_check_branch
        %122 = sbr.rel (%p119) target = $region12
      $region11: #{tpu_custom_call.1} parent=5 // pred_region
        %s123 = ssub.s32 %s15, 1
        // Predicated region
        $region13: #{tpu_custom_call.1} parent=11 // pred_check
          %p124 = pneg %p62
        $region14: #{tpu_custom_call.1} parent=11 // pred_check_branch
          %126 = sbr.rel (%p124) target = $region16
        $region15: #{tpu_custom_call.1} parent=11 // pred_region
          _
        $region16: #{tpu_custom_call.1} parent=11 // pred_fallthru
          _
        // Predicated region
        $region17: #{tpu_custom_call.1} parent=11 // pred_check
          %p127 = pneg %p83
        $region18: #{tpu_custom_call.1} parent=11 // pred_check_branch
          %129 = sbr.rel (%p127) target = $region20
        $region19: #{tpu_custom_call.1} parent=11 // pred_region
          _
        $region20: #{tpu_custom_call.1} parent=11 // pred_fallthru
          _
      $region12: #{tpu_custom_call.1} parent=5 // pred_fallthru
        _
      %p130 = scmp.lt.s32.totalorder %s15, 2
      // Predicated region
      $region21: #{tpu_custom_call.1} parent=5 // pred_check
        %p131 = pneg %p130
      $region22: #{tpu_custom_call.1} parent=5 // pred_check_branch
        %133 = sbr.rel (%p131) target = $region24
      $region23: #{tpu_custom_call.1} parent=5 // pred_region
        // Predicated region
        $region25: #{tpu_custom_call.1} parent=23 // pred_check
          %p134 = pneg %p35
        $region26: #{tpu_custom_call.1} parent=23 // pred_check_branch
          %136 = sbr.rel (%p134) target = $region28
        $region27: #{tpu_custom_call.1} parent=23 // pred_region
          %s137 = sand.u32 %s25, 1
          %s138 = scalar_lea.sflag [#allocation3], %s137
          %s139 = sand.u32 %s25, 1
          %s140 = smul.addr %s139, 8
          %s141 = scalar_lea.vmem [#allocation2], %s140
          %s143 = ssub.s32 128, 128
          %144 = vsyncadd %s138, %s143
          %s145 = smul.addr %s15, 2
          %s146 = smul.addr %s145, 64
          %s147 = scalar_lea.hbm %s0, %s146
          %s149 = sshll.u32 %s141, 4
          %s150 = int_to_ptr.vmem [resolvable:$true] %s149
          %152 = dma.hbm_to_vmem [thread:$0]  %s147, 128, %s150, %s138
        $region28: #{tpu_custom_call.1} parent=23 // pred_fallthru
          _
      $region24: #{tpu_custom_call.1} parent=5 // pred_fallthru
        _
      %p153 = scmp.le.s32.totalorder 1, %s15
      %p154 = scmp.lt.s32.totalorder %s15, 3
      %p155 = pnand %p153, %p154
      %p156 = pneg %p155
      // Predicated region
      $region29: #{tpu_custom_call.1} parent=5 // pred_check
        _
      $region30: #{tpu_custom_call.1} parent=5 // pred_check_branch
        %158 = sbr.rel (%p155) target = $region32
      $region31: #{tpu_custom_call.1} parent=5 // pred_region
        %s159 = ssub.s32 %s15, 1
        %s160 = sand.u32 %s28, 1
        %s161 = scalar_lea.sflag [#allocation3], %s160
        %s162 = sand.u32 %s28, 1
        %s163 = smul.addr %s162, 8
        %s164 = scalar_lea.vmem [#allocation2], %s163
        // Predicated region
        $region33: #{tpu_custom_call.1} parent=31 // pred_check
          %p165 = pneg %p41
        $region34: #{tpu_custom_call.1} parent=31 // pred_check_branch
          %167 = sbr.rel (%p165) target = $region36
        $region35: #{tpu_custom_call.1} parent=31 // pred_region
          %168 = dma.done %s161, 128
        $region36: #{tpu_custom_call.1} parent=31 // pred_fallthru
          _
        %s169 = sand.u32 %s28, 1
        %s170 = scalar_lea.sflag [#allocation3], %s169
        %s171 = sand.u32 %s28, 1
        %s172 = smul.addr %s171, 8
        %s173 = scalar_lea.vmem [#allocation2], %s172
        %p174 = pneg %p41
        %p175 = pneg %p38
        %p176 = pneg %p62
        %p177 = pneg %p59
        %p178 = pneg %p83
        %p179 = pneg %p80
        %p180 = pneg %p109
        %p181 = pneg %p106
        %s182 = sand.u32 %s96, 1
        %s183 = scalar_lea.sflag [#allocation4], %s182
        %s184 = sand.u32 %s96, 1
        %s185 = smul.addr %s184, 8
        %s186 = scalar_lea.vmem [#allocation5], %s185
        %v187 = vld [vmem:[%s164] sm:$0xff]
        %v189 = vcombine.high %v187, %v187
        %vm191 = vcmask 1043456
        %v192 = vsel %vm191, %v187, 0.0
        %v193 = vsel %vm191, %v189, 0.0
        %v194 = vadd.f32 %v192, %v193
        %195 = vadd.xlane.f32.xlu0 %v194
        %v196 = vpop.xlane.xlu0 %195
        %v197 = vsel %vm191, %v196, 0.0
        %v198 = vrot.slane %v197, 4
        %v199 = vadd.f32 %v197, %v198
        %v200 = vrot.slane %v199, 2
        %v201 = vadd.f32 %v199, %v200
        %v202 = vrot.slane %v201, 1
        %v203 = vadd.f32 %v201, %v202
        %v204 = vmul.f32 %v203, 0.0009765625
        %v205 = vsub.f32 %v187, %v204
        %v206 = vmul.f32 %v205, %v205
        %v208 = vcombine.high %v206, %v206
        %v210 = vsel %vm191, %v206, 0.0
        %v211 = vsel %vm191, %v208, 0.0
        %v212 = vadd.f32 %v210, %v211
        %213 = vadd.xlane.f32.xlu0 %v212
        %v214 = vpop.xlane.xlu0 %213
        %v215 = vsel %vm191, %v214, 0.0
        %v216 = vrot.slane %v215, 4
        %v217 = vadd.f32 %v215, %v216
        %v218 = vrot.slane %v217, 2
        %v219 = vadd.f32 %v217, %v218
        %v220 = vrot.slane %v219, 1
        %v221 = vadd.f32 %v219, %v220
        %v222 = vmul.f32 %v221, 0.0009765625
        %v223 = vadd.f32 %v222, 1e-05
        %v224 = vrsqrt.pop %v223
        %v225 = vld [vmem:[%s1] sm:$0xf]
        %v226 = vmul.f32 %v225, %v224
        %v227 = vld [vmem:[%s2] sm:$0xf]
        %229 = vset.pattern.permute.xlu0 0
        %230 = vperm.xlu0 %229, %v226
        %v231 = vpop.permute.xlu0 %230
        %v233 = vunpack.c.l.s4 839922192
        %v234 = vunpack.c.0.s8 %v233
        %v235 = vlaneseq
        %v236 = vshrl.u32 %v235, 7
        %v237 = vsub.s32 %v234, %v236
        %v238 = vrot.slane %v231, %v237
        %v240 = vmul.f32 %v205, %v238
        %242 = vset.pattern.permute.xlu0 0
        %243 = vperm.xlu0 %242, %v227
        %v244 = vpop.permute.xlu0 %243
        %v246 = vunpack.c.l.s4 839922192
        %v247 = vunpack.c.0.s8 %v246
        %v248 = vlaneseq
        %v249 = vshrl.u32 %v248, 7
        %v250 = vsub.s32 %v247, %v249
        %v251 = vrot.slane %v244, %v250
        %v253 = vadd.f32 %v240, %v251
        %254 = vst [vmem:[%s186] sm:$0xff] %v253
        %s255 = sand.u32 %s96, 1
        %s256 = scalar_lea.sflag [#allocation4], %s255
        %s257 = sand.u32 %s96, 1
        %s258 = smul.addr %s257, 8
        %s259 = scalar_lea.vmem [#allocation5], %s258
        // Predicated region
        $region37: #{tpu_custom_call.1} parent=31 // pred_check
          %p260 = pneg %p106
        $region38: #{tpu_custom_call.1} parent=31 // pred_check_branch
          %262 = sbr.rel (%p260) target = $region40
        $region39: #{tpu_custom_call.1} parent=31 // pred_region
          %s264 = ssub.s32 128, 128
          %265 = vsyncadd %s256, %s264
          %s266 = smul.addr %s20, 2
          %s267 = smul.addr %s266, 64
          %s268 = scalar_lea.hbm %s3, %s267
          %s270 = sshll.u32 %s259, 4
          %s271 = int_to_ptr.vmem [resolvable:$true] %s270
          %273 = dma.vmem_to_hbm [thread:$0]  %s271, 128, %s268, %s256
        $region40: #{tpu_custom_call.1} parent=31 // pred_fallthru
          _
      $region32: #{tpu_custom_call.1} parent=5 // pred_fallthru
        _
      %p274 = scmp.le.s32.totalorder 2, %s15
      // Predicated region
      $region41: #{tpu_custom_call.1} parent=5 // pred_check
        %p275 = pneg %p274
      $region42: #{tpu_custom_call.1} parent=5 // pred_check_branch
        %277 = sbr.rel (%p275) target = $region44
      $region43: #{tpu_custom_call.1} parent=5 // pred_region
        %s278 = ssub.s32 %s15, 2
        // Predicated region
        $region45: #{tpu_custom_call.1} parent=43 // pred_check
          %p279 = pneg %p112
        $region46: #{tpu_custom_call.1} parent=43 // pred_check_branch
          %281 = sbr.rel (%p279) target = $region48
        $region47: #{tpu_custom_call.1} parent=43 // pred_region
          %s282 = sand.u32 %s97, 1
          %s283 = scalar_lea.sflag [#allocation4], %s282
          %s284 = sand.u32 %s97, 1
          %s285 = smul.addr %s284, 8
          %s286 = scalar_lea.vmem [#allocation5], %s285
          %287 = dma.done %s283, 128
        $region48: #{tpu_custom_call.1} parent=43 // pred_fallthru
          _
      $region44: #{tpu_custom_call.1} parent=5 // pred_fallthru
        _
    $region6: #{tpu_custom_call.1} parent=1 // loop_footer
      %s19 = sadd.s32 1, %s15
    $region7: #{tpu_custom_call.1} parent=1 // loop_footer_branch
      %14 = sbr.rel target = $region3
    $region8: #{tpu_custom_call.1} parent=1 // loop_exit
      _
    %288 = vsyncpa [#allocation3], 1
    %s289 = scalar_lea.sflag [#allocation3], 1
    %290 = vsyncpa %s289, 1
    %291 = vsyncpa [#allocation4], 1
    %s292 = scalar_lea.sflag [#allocation4], 1
    %293 = vsyncpa %s292, 1

</llo_original>
